<compile_context>
chip_gen: v7x
topology: tpu7x:2x2x1
jax: 0.10.0
libtpu: 0.0.40
codegen_flags: <defaults>
</compile_context>

<pallas_src>
import functools

import numpy as np
import jax
import jax.numpy as jnp
from jax.experimental import pallas as pl
from jax.experimental.pallas import tpu as pltpu


def _fft_kernel(x_ref, cmat_ref, scl_ref, bcat_ref, o_ref, c_ref, *, precision):
    # x_ref:    (nb, 1, H, W)   channel 0 of the NCHW input (picked by BlockSpec)
    # cmat_ref: (th, H)         row twiddles C[u,h] = cos(pi*u*(2h+1)/(2H)), row-tiled
    # scl_ref:  (th, 2)         per-row scales [2cos(pi*u/(2H)), 2sin(pi*u/(2H))]
    # bcat_ref: (W, 2*Wh)       column twiddles [Brt | Bit]
    # o_ref:    (nb, 2, th, Wh) channel 0 = real, channel 1 = imag
    # c_ref:    (nb*H, 2*Wh)    VMEM scratch: column-DFT result, reused by row tiles
    nb = x_ref.shape[0]
    H = x_ref.shape[2]
    W = x_ref.shape[3]
    Wh = o_ref.shape[3]

    # Column DFT for every row of every image in the batch block: ONE matmul
    # with M = nb*H.  Computed only on the first row-tile step (r == 0) and
    # cached in VMEM scratch for the remaining row tiles of this batch block.
    @pl.when(pl.program_id(1) == 0)
    def _():
        x2 = x_ref[...].reshape(nb * H, W).astype(bcat_ref.dtype)
        c_ref[...] = jnp.dot(
            x2, bcat_ref[...], preferred_element_type=jnp.float32,
            precision=precision).astype(c_ref.dtype)

    cmat = cmat_ref[...]
    dr = scl_ref[:, 0:1]            # (th, 1)
    di = scl_ref[:, 1:2]            # (th, 1)

    # Row DFT per image (nb is small and static -> unrolled matmuls), then the
    # DCT factorisation is undone with two per-row diagonal scalings (VPU) and
    # combined into real / imag parts.
    for i in range(nb):
        ci = c_ref[pl.ds(i * H, H), :]                                   # (H, 2Wh)
        q = jnp.dot(cmat, ci, preferred_element_type=jnp.float32,
                    precision=precision)                                 # (th, 2Wh)
        qr = q[:, :Wh]
        qi = q[:, Wh:]
        o_ref[i, 0] = dr * qr - di * qi          # real
        o_ref[i, 1] = dr * qi + di * qr          # imag


@functools.lru_cache(maxsize=8)
def _make_twiddles(H, W, dtype_name):
    """DFT twiddle tables (deterministic, cached per (H, W, dtype)).

    The mirrored row transform satisfies
      Ar[u,h] = 2*cos(pi*u/(2H)) * C[u,h],   Ai[u,h] = 2*sin(pi*u/(2H)) * C[u,h]
    with C[u,h] = cos(pi*u*(2h+1)/(2H)), so one (H,H) matmul + two per-row
    scalings replaces the (2H,H) stacked row matmul of the previous version.
    """
    dtype = jnp.dtype(dtype_name)
    u = np.arange(H, dtype=np.float64)[:, None]
    h = np.arange(H, dtype=np.float64)[None, :]
    C = np.cos(np.pi * u * (2.0 * h + 1.0) / (2.0 * H))                  # (H, H)
    scales = np.concatenate(
        [2.0 * np.cos(np.pi * u / (2.0 * H)),
         2.0 * np.sin(np.pi * u / (2.0 * H))], axis=1)                   # (H, 2)

    Wh = W // 2
    v = np.arange(Wh, dtype=np.float64)[:, None]
    w = np.arange(W, dtype=np.float64)[None, :]
    angB = -2.0 * np.pi * v * w / W
    Bcat = np.concatenate([np.cos(angB).T, np.sin(angB).T], axis=1)      # (W, 2Wh)

    return (jnp.asarray(C, dtype),
            jnp.asarray(scales, jnp.float32),
            jnp.asarray(Bcat, dtype))


def _pick_block_batch(N, H):
    """Images per grid step: ~512 column-DFT rows per step, but keep >= 2 batch
    grid steps when N allows so both v7x TensorCores get work."""
    nb = max(1, min(N, 512 // max(H, 1)))
    if N >= 2:
        nb = min(nb, max(1, N // 2))
    return nb


def _pick_row_tile(H):
    """Rows of the row-DFT output per step: whole H for modest sizes; 256-row
    chunks for large H so twiddles + output slab fit v7x's 64 MiB VMEM."""
    return H if H <= 256 else 256


def _spec(shape, index_map, single_buffer=False):
    """BlockSpec; constant-index operands get a single VMEM buffer (no
    redundant double-buffer copy) when the running JAX supports pipeline_mode."""
    if single_buffer:
        try:
            return pl.BlockSpec(shape, index_map, pipeline_mode=pl.Buffered(1))
        except Exception:  # older JAX without pipeline_mode / Buffered
            pass
    return pl.BlockSpec(shape, index_map)


def _vmem_limit_bytes(nb, H, W, Wh, th, twb):
    """Explicit scoped-VMEM budget (defaults are 16 MiB v5e / 32 MiB v6e,v7x)."""
    est = (
        2 * nb * H * W * 4            # input block, double-buffered (f32)
        + 2 * nb * 2 * th * Wh * 4    # output block, double-buffered (f32)
        + 2 * th * (H + 4) * twb      # row twiddles + scales buffers
        + W * 2 * Wh * twb            # column twiddles (single-buffered)
        + nb * H * 2 * Wh * twb       # column-DFT scratch
        + nb * H * W * twb            # cast copy of x feeding the MXU
        + 4 * th * 2 * Wh * 4         # q / combine temporaries (f32)
    )
    return int(min(max(est * 3 // 2 + (4 << 20), 32 << 20), 96 << 20))


def fft_forward(inputs, precision=None, block_batch=None, row_tile=None):
    """inputs: (N, C, H, W) float32 -> (N, 2, H, W//2) float32.

    precision=None (default): bf16 twiddles/operands, f32 MXU accumulation
    (same arithmetic the MXU's default single-pass mode uses; per-bin error
    grows ~bf16_eps * sqrt(H*W)).  Pass jax.lax.Precision.HIGH or HIGHEST for
    f32 twiddles and multi-pass MXU matmuls when exact spectra are needed.
    """
    N, _, H, W = inputs.shape
    assert W % 2 == 0, "W must be even (half-spectrum output)"
    Wh = W // 2
    exact = precision is not None
    tw_dtype = jnp.float32 if exact else jnp.bfloat16
    twb = jnp.dtype(tw_dtype).itemsize
    cmat, scales, bcat = _make_twiddles(H, W, jnp.dtype(tw_dtype).name)

    nb = block_batch if block_batch is not None else _pick_block_batch(N, H)
    th = row_tile if row_tile is not None else _pick_row_tile(H)
    gb, gr = pl.cdiv(N, nb), pl.cdiv(H, th)
    const_row_tw = (gr == 1)   # row twiddles constant across the whole grid

    flops = (2 * N * H * W * (2 * Wh)        # column DFT
             + 2 * N * H * H * (2 * Wh)      # row DFT (DCT form)
             + 6 * N * H * Wh)               # diagonal scalings / combine
    bytes_accessed = ((N * H * W + N * 2 * H * Wh) * 4
                      + (H * H + W * 2 * Wh) * twb + H * 2 * 4)

    out = pl.pallas_call(
        functools.partial(_fft_kernel, precision=precision),
        out_shape=jax.ShapeDtypeStruct((N, 2, H, Wh), jnp.float32),
        grid_spec=pltpu.PrefetchScalarGridSpec(
            num_scalar_prefetch=0,
            grid=(gb, gr),
            in_specs=[
                # Channel 0 is selected straight from NCHW by the DMA; constant
                # across the row-tile axis so it is only fetched once per b.
                pl.BlockSpec((nb, 1, H, W), lambda b, r: (b, 0, 0, 0)),
                _spec((th, H), lambda b, r: (r, 0), single_buffer=const_row_tw),
                _spec((th, 2), lambda b, r: (r, 0), single_buffer=const_row_tw),
                _spec((W, 2 * Wh), lambda b, r: (0, 0), single_buffer=True),
            ],
            out_specs=pl.BlockSpec((nb, 2, th, Wh), lambda b, r: (b, 0, r, 0)),
            scratch_shapes=[pltpu.VMEM((nb * H, 2 * Wh), tw_dtype)],
        ),
        compiler_params=pltpu.CompilerParams(
            dimension_semantics=("parallel", "arbitrary"),
            vmem_limit_bytes=_vmem_limit_bytes(nb, H, W, Wh, th, twb),
        ),
        cost_estimate=pl.CostEstimate(
            flops=flops, transcendentals=0, bytes_accessed=bytes_accessed),
    )(inputs, cmat, scales, bcat)
    return out


def fft_reference(inputs):
    """Pure-JAX reference mirroring the PyTorch forward."""
    x = inputs[:, 0, :, :]
    xe = jnp.concatenate([x, jnp.flip(x, axis=1)], axis=1)   # (N, 2H, W)
    FF = jnp.fft.fft2(xe)                                    # full, unnormalized
    H2, W = xe.shape[1], xe.shape[2]
    FF = FF[:, :H2 // 2, :W // 2]
    return jnp.stack([FF.real, FF.imag], axis=1).astype(jnp.float32)


if __name__ == "__main__":
    key = jax.random.PRNGKey(0)
    # NCHW input, small shapes: N=2, C=4, H=16, W=16
    x = jax.random.normal(key, (2, 4, 16, 16), dtype=jnp.float32)

    ref = np.asarray(jax.block_until_ready(fft_reference(x)))

    # Fast path: bf16 twiddles/operands, f32 accumulation -> compare relative
    # to the spectrum scale.
    out = np.asarray(jax.block_until_ready(fft_forward(x)))
    assert out.shape == (2, 2, 16, 8), out.shape
    scale = float(np.max(np.abs(ref)))
    np.testing.assert_allclose(out, ref, rtol=2e-2, atol=2e-2 * scale)

    # Exact path: f32 twiddles + HIGHEST-precision matmuls must match tightly.
    out_exact = np.asarray(jax.block_until_ready(
        fft_forward(x, precision=jax.lax.Precision.HIGHEST)))
    np.testing.assert_allclose(out_exact, ref, rtol=1e-3, atol=5e-3)

    print("KERNEL_OK")
</pallas_src>

<mosaic_0001>
module attributes {stable_mosaic.version = 11 : i64} {
  func.func @_fft_kernel(%arg0: i32, %arg1: i32, %arg2: memref<1x1x16x16xf32, #tpu.memory_space<vmem>>, %arg3: memref<16x16xbf16, #tpu.memory_space<vmem>>, %arg4: memref<16x2xf32, #tpu.memory_space<vmem>>, %arg5: memref<16x16xbf16, #tpu.memory_space<vmem>>, %arg6: memref<1x2x16x8xf32, #tpu.memory_space<vmem>>, %arg7: memref<16x16xbf16, #tpu.memory_space<vmem>>) attributes {dimension_semantics = [#tpu.dimension_semantics<parallel>, #tpu.dimension_semantics<arbitrary>], iteration_bounds = array<i64: 2, 1>, scalar_prefetch = 0 : i64, scratch_operands = 1 : i64, tpu.core_type = #tpu.core_type<tc>, window_params = [{transform_indices = @transform_0, window_bounds = array<i64: 1, 1, 16, 16>}, {pipeline_mode = #tpu.pipeline_mode<synchronous>, transform_indices = @transform_1, window_bounds = array<i64: 16, 16>}, {pipeline_mode = #tpu.pipeline_mode<synchronous>, transform_indices = @transform_2, window_bounds = array<i64: 16, 2>}, {pipeline_mode = #tpu.pipeline_mode<synchronous>, transform_indices = @transform_3, window_bounds = array<i64: 16, 16>}, {transform_indices = @transform_4, window_bounds = array<i64: 1, 2, 16, 8>}]} {
    %c0_i32 = arith.constant 0 : i32
    %0 = arith.cmpi eq, %arg1, %c0_i32 : i32
    %1 = arith.extui %0 : i1 to i32
    %c0_i32_0 = arith.constant 0 : i32
    %2 = arith.cmpi ne, %1, %c0_i32_0 : i32
    scf.if %2 {
      %c0_15 = arith.constant 0 : index
      %c0_16 = arith.constant 0 : index
      %c0_17 = arith.constant 0 : index
      %c0_18 = arith.constant 0 : index
      %26 = vector.load %arg2[%c0_15, %c0_16, %c0_17, %c0_18] : memref<1x1x16x16xf32, #tpu.memory_space<vmem>>, vector<1x1x16x16xf32>
      %27 = vector.shape_cast %26 : vector<1x1x16x16xf32> to vector<16x16xf32>
      %28 = arith.truncf %27 : vector<16x16xf32> to vector<16x16xbf16>
      %c0_19 = arith.constant 0 : index
      %c0_20 = arith.constant 0 : index
      %29 = vector.load %arg5[%c0_19, %c0_20] : memref<16x16xbf16, #tpu.memory_space<vmem>>, vector<16x16xbf16>
      %cst_21 = arith.constant dense<0.000000e+00> : vector<16x16xf32>
      %30 = tpu.matmul %28, %29, %cst_21 {dimension_numbers = #tpu.dot_dimension_numbers<[1], [0], [0], [1], [0, 0, 1, 1], [], []>} : vector<16x16xbf16>, vector<16x16xbf16>, vector<16x16xf32> -> vector<16x16xf32>
      %31 = arith.truncf %30 : vector<16x16xf32> to vector<16x16xbf16>
      %c0_22 = arith.constant 0 : index
      %c0_23 = arith.constant 0 : index
      %32 = vector.load %arg7[%c0_22, %c0_23] : memref<16x16xbf16, #tpu.memory_space<vmem>>, vector<16x16xbf16>
      tpu.vector_store %arg7[%c0_22, %c0_23], %31 {strides = array<i32>} : memref<16x16xbf16, #tpu.memory_space<vmem>>, vector<16x16xbf16>,
    } else {
    }
    %c0 = arith.constant 0 : index
    %c0_1 = arith.constant 0 : index
    %3 = vector.load %arg3[%c0, %c0_1] : memref<16x16xbf16, #tpu.memory_space<vmem>>, vector<16x16xbf16>
    %c0_2 = arith.constant 0 : index
    %c0_3 = arith.constant 0 : index
    %4 = vector.load %arg4[%c0_2, %c0_3] : memref<16x2xf32, #tpu.memory_space<vmem>>, vector<16x1xf32>
    %c0_4 = arith.constant 0 : index
    %c1 = arith.constant 1 : index
    %5 = vector.load %arg4[%c0_4, %c1] : memref<16x2xf32, #tpu.memory_space<vmem>>, vector<16x1xf32>
    %c0_5 = arith.constant 0 : index
    %c0_6 = arith.constant 0 : index
    %6 = vector.load %arg7[%c0_5, %c0_6] : memref<16x16xbf16, #tpu.memory_space<vmem>>, vector<16x16xbf16>
    %cst = arith.constant dense<0.000000e+00> : vector<16x16xf32>
    %7 = tpu.matmul %3, %6, %cst {dimension_numbers = #tpu.dot_dimension_numbers<[1], [0], [0], [1], [0, 0, 1, 1], [], []>} : vector<16x16xbf16>, vector<16x16xbf16>, vector<16x16xf32> -> vector<16x16xf32>
    %8 = vector.extract_strided_slice %7 {offsets = [0, 0], sizes = [16, 8], strides = [1, 1]} : vector<16x16xf32> to vector<16x8xf32>
    %9 = vector.extract_strided_slice %7 {offsets = [0, 8], sizes = [16, 8], strides = [1, 1]} : vector<16x16xf32> to vector<16x8xf32>
    %10 = vector.broadcast %4 : vector<16x1xf32> to vector<16x8xf32>
    %11 = arith.mulf %10, %8 : vector<16x8xf32>
    %12 = vector.broadcast %5 : vector<16x1xf32> to vector<16x8xf32>
    %13 = arith.mulf %12, %9 : vector<16x8xf32>
    %14 = arith.subf %11, %13 : vector<16x8xf32>
    %c0_7 = arith.constant 0 : index
    %c0_8 = arith.constant 0 : index
    %c0_9 = arith.constant 0 : index
    %c0_10 = arith.constant 0 : index
    %15 = vector.load %arg6[%c0_7, %c0_8, %c0_9, %c0_10] : memref<1x2x16x8xf32, #tpu.memory_space<vmem>>, vector<1x1x16x8xf32>
    %16 = vector.shape_cast %15 : vector<1x1x16x8xf32> to vector<16x8xf32>
    %17 = vector.shape_cast %14 : vector<16x8xf32> to vector<1x1x16x8xf32>
    tpu.vector_store %arg6[%c0_7, %c0_8, %c0_9, %c0_10], %17 {strides = array<i32>} : memref<1x2x16x8xf32, #tpu.memory_space<vmem>>, vector<1x1x16x8xf32>,
    %18 = vector.broadcast %4 : vector<16x1xf32> to vector<16x8xf32>
    %19 = arith.mulf %18, %9 : vector<16x8xf32>
    %20 = vector.broadcast %5 : vector<16x1xf32> to vector<16x8xf32>
    %21 = arith.mulf %20, %8 : vector<16x8xf32>
    %22 = arith.addf %19, %21 : vector<16x8xf32>
    %c0_11 = arith.constant 0 : index
    %c1_12 = arith.constant 1 : index
    %c0_13 = arith.constant 0 : index
    %c0_14 = arith.constant 0 : index
    %23 = vector.load %arg6[%c0_11, %c1_12, %c0_13, %c0_14] : memref<1x2x16x8xf32, #tpu.memory_space<vmem>>, vector<1x1x16x8xf32>
    %24 = vector.shape_cast %23 : vector<1x1x16x8xf32> to vector<16x8xf32>
    %25 = vector.shape_cast %22 : vector<16x8xf32> to vector<1x1x16x8xf32>
    tpu.vector_store %arg6[%c0_11, %c1_12, %c0_13, %c0_14], %25 {strides = array<i32>} : memref<1x2x16x8xf32, #tpu.memory_space<vmem>>, vector<1x1x16x8xf32>,
    return
  }
  func.func @transform_0(%arg0: i32, %arg1: i32) -> (i32, i32, i32, i32) {
    %c0_i32 = arith.constant 0 : i32
    %c0_i32_0 = arith.constant 0 : i32
    %c0_i32_1 = arith.constant 0 : i32
    %c0_i32_2 = arith.constant 0 : i32
    return %arg0, %c0_i32, %c0_i32_0, %c0_i32_1 : i32, i32, i32, i32
  }
  func.func @transform_1(%arg0: i32, %arg1: i32) -> (i32, i32) {
    %c0_i32 = arith.constant 0 : i32
    %c0_i32_0 = arith.constant 0 : i32
    return %arg1, %c0_i32 : i32, i32
  }
  func.func @transform_2(%arg0: i32, %arg1: i32) -> (i32, i32) {
    %c0_i32 = arith.constant 0 : i32
    %c0_i32_0 = arith.constant 0 : i32
    return %arg1, %c0_i32 : i32, i32
  }
  func.func @transform_3(%arg0: i32, %arg1: i32) -> (i32, i32) {
    %c0_i32 = arith.constant 0 : i32
    %c0_i32_0 = arith.constant 0 : i32
    %c0_i32_1 = arith.constant 0 : i32
    return %c0_i32, %c0_i32_0 : i32, i32
  }
  func.func @transform_4(%arg0: i32, %arg1: i32) -> (i32, i32, i32, i32) {
    %c0_i32 = arith.constant 0 : i32
    %c0_i32_0 = arith.constant 0 : i32
    %c0_i32_1 = arith.constant 0 : i32
    return %arg0, %c0_i32, %arg1, %c0_i32_0 : i32, i32, i32, i32
  }
}

</mosaic_0001>

<llo_original>
// kernel: tpu_custom_call.1
$region0: #{tpu_custom_call.1}
  #allocation0 [shape = 'u32[]', space=smem, size = 0x4, offset = 0x4, fixed_abs, tag = 'smem constant byte address 0x4 - core index']
  #allocation1 [shape = 'u32[144,128]{1,0:T(1,128)}', space=vmem, size = 0x12000, scoped, tag = 'internal scratch']
  #allocation2 [shape = 'bf16[16,16]{1,0:T(16,128)(2,1)}', space=vmem, size = 0x1000, scoped, tag = 'scratch operand']
  %s0 = inlined_call_operand.hbm [shape: f32[2,4,16,16], index: 0, kind: input, shape index: {}]
  %s1 = inlined_call_operand.vmem [shape: bf16[16,16], index: 1, kind: input, shape index: {}]
  %s2 = inlined_call_operand.vmem [shape: f32[16,2], index: 2, kind: input, shape index: {}]
  %s3 = inlined_call_operand.vmem [shape: bf16[16,16], index: 3, kind: input, shape index: {}]
  %s4 = inlined_call_operand.vmem [shape: f32[2,2,16,8], index: 4, kind: output, shape index: {}]
  %s5 = sld [smem:[#allocation0]]
  $region57: #{tpu_custom_call.1} parent=0
    _
  %s7 = ssub.s32 1, %s5
  %s8 = scalar_select 0, %s7, %s5
  $region1: #{tpu_custom_call.1} parent=0
    #allocation3 [shape = 'u8[16384]{0}', space=vmem, size = 0x4000, scoped, tag = 'input window, operand 0']
    #allocation4 [shape = 's32[2]{0}', space=sflag, size = 0x8, scoped, tag = 'scoped memory for tpu_custom_call.1']
    %9 = vsyncpa [#allocation4], 0
    %s10 = scalar_lea.sflag [#allocation4], 1
    %11 = vsyncpa %s10, 0
    loop: start=0, step=1, limit=4
    $region2: #{tpu_custom_call.1} parent=1 // loop_pre_header
      _
    $region3: #{tpu_custom_call.1} parent=1 // loop_header
      %s13 = sphi 0, %s17
      %p14 = scmp.ge.s32.totalorder %s13, 4
      %s20 = sphi 0, %s32
      %s21 = sphi 0, %s28
      %s22 = sphi 0, %s20
      %s23 = sphi 0, %s21
      %s24 = sphi 0, %s22
      %s25 = sphi 0, %s23
      %s35 = sphi 0, %s37
      %s38 = sphi 0, %s35
      %s39 = sphi 0, %s38
      %s55 = sphi 0, %s39
      %s61 = sphi 0, %s63
      %s64 = sphi 0, %s61
      %s65 = sphi 0, %s64
      %s81 = sphi 0, %s65
      %s87 = sphi 0, %s89
      %s90 = sphi 0, %s87
      %s91 = sphi 0, %s90
      %s107 = sphi 0, %s91
      %s111 = sphi 0, %s111
      %s113 = sphi 0, %s111
      %s114 = sphi 0, %s113
      %s128 = sphi 0, %s114
      %s136 = sphi 0, %s138
      %s139 = sphi 0, %s136
      %s140 = sphi 0, %s139
      %s156 = sphi 0, %s140
    $region4: #{tpu_custom_call.1} parent=1 // loop_header_branch
      %16 = sbr.rel (%p14) target = $region8
    $region5: #{tpu_custom_call.1} parent=1 // loop_body
      %s18 = ssub.s32 %s13, 1
      %s19 = ssub.s32 %s13, 2
      %s26 = sadd.s32 1, %s21
      %p27 = scmp.ge.s32.totalorder %s26, 1
      %s28 = scalar_select %p27, 0, %s26
      %s29 = sadd.s32 1, %s20
      %s30 = scalar_select %p27, %s29, %s20
      %p31 = scmp.ge.s32.totalorder %s30, 2
      %s32 = scalar_select %p31, 0, %s30
      %s33 = ssub.s32 %s20, %s32
      %p34 = scmp.eq.s32.totalorder %s33, 0
      %s36 = sadd.s32 %s35, 1
      %s37 = scalar_select %p34, %s35, %s36
      %p40 = pneg %p34
      %p41 = scmp.eq.s32.totalorder %s13, 1
      %p42 = por %p40, %p41
      %p43 = scmp.ne.s32.totalorder %s35, %s38
      %p44 = scmp.eq.s32.totalorder %s13, 0
      %p45 = por %p43, %p44
      %p46 = scmp.ne.s32.totalorder %s35, %s38
      %p47 = scmp.eq.s32.totalorder %s18, 1
      %p48 = por %p46, %p47
      %p49 = scmp.ne.s32.totalorder %s38, %s39
      %p50 = scmp.eq.s32.totalorder %s18, 0
      %p51 = por %p49, %p50
      %p52 = scmp.ne.s32.totalorder %s38, %s39
      %p53 = scmp.eq.s32.totalorder %s19, 1
      %p54 = por %p52, %p53
      %p56 = scmp.ne.s32.totalorder %s39, %s55
      %p57 = scmp.eq.s32.totalorder %s19, 0
      %p58 = por %p56, %p57
      %s59 = ssub.s32 %s21, %s28
      %p60 = scmp.eq.s32.totalorder %s59, 0
      %s62 = sadd.s32 %s61, 1
      %s63 = scalar_select %p60, %s61, %s62
      %p66 = pneg %p60
      %p67 = scmp.eq.s32.totalorder %s13, 1
      %p68 = por %p66, %p67
      %p69 = scmp.ne.s32.totalorder %s61, %s64
      %p70 = scmp.eq.s32.totalorder %s13, 0
      %p71 = por %p69, %p70
      %p72 = scmp.ne.s32.totalorder %s61, %s64
      %p73 = scmp.eq.s32.totalorder %s18, 1
      %p74 = por %p72, %p73
      %p75 = scmp.ne.s32.totalorder %s64, %s65
      %p76 = scmp.eq.s32.totalorder %s18, 0
      %p77 = por %p75, %p76
      %p78 = scmp.ne.s32.totalorder %s64, %s65
      %p79 = scmp.eq.s32.totalorder %s19, 1
      %p80 = por %p78, %p79
      %p82 = scmp.ne.s32.totalorder %s65, %s81
      %p83 = scmp.eq.s32.totalorder %s19, 0
      %p84 = por %p82, %p83
      %s85 = ssub.s32 %s21, %s28
      %p86 = scmp.eq.s32.totalorder %s85, 0
      %s88 = sadd.s32 %s87, 1
      %s89 = scalar_select %p86, %s87, %s88
      %p92 = pneg %p86
      %p93 = scmp.eq.s32.totalorder %s13, 1
      %p94 = por %p92, %p93
      %p95 = scmp.ne.s32.totalorder %s87, %s90
      %p96 = scmp.eq.s32.totalorder %s13, 0
      %p97 = por %p95, %p96
      %p98 = scmp.ne.s32.totalorder %s87, %s90
      %p99 = scmp.eq.s32.totalorder %s18, 1
      %p100 = por %p98, %p99
      %p101 = scmp.ne.s32.totalorder %s90, %s91
      %p102 = scmp.eq.s32.totalorder %s18, 0
      %p103 = por %p101, %p102
      %p104 = scmp.ne.s32.totalorder %s90, %s91
      %p105 = scmp.eq.s32.totalorder %s19, 1
      %p106 = por %p104, %p105
      %p108 = scmp.ne.s32.totalorder %s91, %s107
      %p109 = scmp.eq.s32.totalorder %s19, 0
      %p110 = por %p108, %p109
      %s112 = sadd.s32 %s111, 1
      %p115 = scmp.eq.s32.totalorder %s13, 1
      %p116 = scmp.ne.s32.totalorder %s111, %s113
      %p117 = scmp.eq.s32.totalorder %s13, 0
      %p118 = por %p116, %p117
      %p119 = scmp.ne.s32.totalorder %s111, %s113
      %p120 = scmp.eq.s32.totalorder %s18, 1
      %p121 = por %p119, %p120
      %p122 = scmp.ne.s32.totalorder %s113, %s114
      %p123 = scmp.eq.s32.totalorder %s18, 0
      %p124 = por %p122, %p123
      %p125 = scmp.ne.s32.totalorder %s113, %s114
      %p126 = scmp.eq.s32.totalorder %s19, 1
      %p127 = por %p125, %p126
      %p129 = scmp.ne.s32.totalorder %s114, %s128
      %p130 = scmp.eq.s32.totalorder %s19, 0
      %p131 = por %p129, %p130
      %s132 = ssub.s32 %s20, %s32
      %s133 = ssub.s32 %s21, %s28
      %s134 = sor.u32 %s132, %s133
      %p135 = scmp.eq.s32.totalorder %s134, 0
      %s137 = sadd.s32 %s136, 1
      %s138 = scalar_select %p135, %s136, %s137
      %p141 = pneg %p135
      %p142 = scmp.eq.s32.totalorder %s13, 1
      %p143 = por %p141, %p142
      %p144 = scmp.ne.s32.totalorder %s136, %s139
      %p145 = scmp.eq.s32.totalorder %s13, 0
      %p146 = por %p144, %p145
      %p147 = scmp.ne.s32.totalorder %s136, %s139
      %p148 = scmp.eq.s32.totalorder %s18, 1
      %p149 = por %p147, %p148
      %p150 = scmp.ne.s32.totalorder %s139, %s140
      %p151 = scmp.eq.s32.totalorder %s18, 0
      %p152 = por %p150, %p151
      %p153 = scmp.ne.s32.totalorder %s139, %s140
      %p154 = scmp.eq.s32.totalorder %s19, 1
      %p155 = por %p153, %p154
      %p157 = scmp.ne.s32.totalorder %s140, %s156
      %p158 = scmp.eq.s32.totalorder %s19, 0
      %p159 = por %p157, %p158
      %p160 = scmp.le.s32.totalorder 1, %s13
      %p161 = scmp.lt.s32.totalorder %s13, 3
      %p162 = pnand %p160, %p161
      %p163 = pneg %p162
      // Predicated region
      $region9: #{tpu_custom_call.1} parent=5 // pred_check
        _
      $region10: #{tpu_custom_call.1} parent=5 // pred_check_branch
        %165 = sbr.rel (%p162) target = $region12
      $region11: #{tpu_custom_call.1} parent=5 // pred_region
        %s166 = ssub.s32 %s13, 1
        // Predicated region
        $region13: #{tpu_custom_call.1} parent=11 // pred_check
          %p167 = pneg %p77
        $region14: #{tpu_custom_call.1} parent=11 // pred_check_branch
          %169 = sbr.rel (%p167) target = $region16
        $region15: #{tpu_custom_call.1} parent=11 // pred_region
          %s170 = smul.u32 2, %s23
          %p171 = scmp.lt.s32.totalorder %s170, 1
          %s172 = scalar_select %p171, %s170, 1
          %s173 = smul.addr %s172, 4
          %s174 = scalar_lea.vmem %s1, %s173
          %s175 = smul.u32 2, %s23
        $region16: #{tpu_custom_call.1} parent=11 // pred_fallthru
          _
        // Predicated region
        $region17: #{tpu_custom_call.1} parent=11 // pred_check
          %p176 = pneg %p103
        $region18: #{tpu_custom_call.1} parent=11 // pred_check_branch
          %178 = sbr.rel (%p176) target = $region20
        $region19: #{tpu_custom_call.1} parent=11 // pred_region
          %s179 = smul.u32 2, %s23
          %p180 = scmp.lt.s32.totalorder %s179, 1
          %s181 = scalar_select %p180, %s179, 1
          %s182 = smul.addr %s181, 8
          %s183 = scalar_lea.vmem %s2, %s182
          %s184 = smul.u32 2, %s23
        $region20: #{tpu_custom_call.1} parent=11 // pred_fallthru
          _
        // Predicated region
        $region21: #{tpu_custom_call.1} parent=11 // pred_check
          %p185 = pneg %p124
        $region22: #{tpu_custom_call.1} parent=11 // pred_check_branch
          %187 = sbr.rel (%p185) target = $region24
        $region23: #{tpu_custom_call.1} parent=11 // pred_region
          _
        $region24: #{tpu_custom_call.1} parent=11 // pred_fallthru
          _
      $region12: #{tpu_custom_call.1} parent=5 // pred_fallthru
        _
      %p188 = scmp.lt.s32.totalorder %s13, 2
      // Predicated region
      $region25: #{tpu_custom_call.1} parent=5 // pred_check
        %p189 = pneg %p188
      $region26: #{tpu_custom_call.1} parent=5 // pred_check_branch
        %191 = sbr.rel (%p189) target = $region28
      $region27: #{tpu_custom_call.1} parent=5 // pred_region
        // Predicated region
        $region29: #{tpu_custom_call.1} parent=27 // pred_check
          %p192 = pneg %p45
        $region30: #{tpu_custom_call.1} parent=27 // pred_check_branch
          %194 = sbr.rel (%p192) target = $region32
        $region31: #{tpu_custom_call.1} parent=27 // pred_region
          %s195 = sand.u32 %s35, 1
          %s196 = scalar_lea.sflag [#allocation4], %s195
          %s197 = sand.u32 %s35, 1
          %s198 = smul.addr %s197, 16
          %s199 = scalar_lea.vmem [#allocation3], %s198
          %s201 = ssub.s32 256, 256
          %202 = vsyncadd %s196, %s201
          %s203 = smul.addr %s20, 8
          %s204 = smul.addr %s203, 128
          %s205 = scalar_lea.hbm %s0, %s204
          %s206 = sshll.u32 %s199, 4
          %s207 = int_to_ptr.vmem [resolvable:$true] %s206
          %212 = dma.hbm_to_vmem [thread:$0]  %s205, 256, %s207, %s196, 128, 128, 8
        $region32: #{tpu_custom_call.1} parent=27 // pred_fallthru
          _
      $region28: #{tpu_custom_call.1} parent=5 // pred_fallthru
        _
      %p213 = scmp.le.s32.totalorder 1, %s13
      %p214 = scmp.lt.s32.totalorder %s13, 3
      %p215 = pnand %p213, %p214
      %p216 = pneg %p215
      // Predicated region
      $region33: #{tpu_custom_call.1} parent=5 // pred_check
        _
      $region34: #{tpu_custom_call.1} parent=5 // pred_check_branch
        %218 = sbr.rel (%p215) target = $region36
      $region35: #{tpu_custom_call.1} parent=5 // pred_region
        %s219 = ssub.s32 %s13, 1
        %s220 = sand.u32 %s38, 1
        %s221 = scalar_lea.sflag [#allocation4], %s220
        %s222 = sand.u32 %s38, 1
        %s223 = smul.addr %s222, 16
        %s224 = scalar_lea.vmem [#allocation3], %s223
        // Predicated region
        $region37: #{tpu_custom_call.1} parent=35 // pred_check
          %p225 = pneg %p51
        $region38: #{tpu_custom_call.1} parent=35 // pred_check_branch
          %227 = sbr.rel (%p225) target = $region40
        $region39: #{tpu_custom_call.1} parent=35 // pred_region
          %228 = dma.done %s221, 256
        $region40: #{tpu_custom_call.1} parent=35 // pred_fallthru
          _
        %s229 = sand.u32 %s38, 1
        %s230 = scalar_lea.sflag [#allocation4], %s229
        %s231 = sand.u32 %s38, 1
        %s232 = smul.addr %s231, 16
        %s233 = scalar_lea.vmem [#allocation3], %s232
        %p234 = pneg %p51
        %p235 = pneg %p48
        %s236 = smul.u32 2, %s23
        %p237 = scmp.lt.s32.totalorder %s236, 1
        %s238 = scalar_select %p237, %s236, 1
        %s239 = smul.addr %s238, 4
        %s240 = scalar_lea.vmem %s1, %s239
        %p241 = pneg %p77
        %p242 = pneg %p74
        %s243 = smul.u32 2, %s23
        %p244 = scmp.lt.s32.totalorder %s243, 1
        %s245 = scalar_select %p244, %s243, 1
        %s246 = smul.addr %s245, 8
        %s247 = scalar_lea.vmem %s2, %s246
        %p248 = pneg %p103
        %p249 = pneg %p100
        %p250 = pneg %p124
        %p251 = pneg %p121
        %p252 = pneg %p152
        %p253 = pneg %p149
        %s254 = smul.u32 2, %s23
        %p255 = scmp.lt.s32.totalorder %s22, 1
        %s256 = scalar_select %p255, %s22, 1
        %p257 = scmp.lt.s32.totalorder %s254, 1
        %s258 = scalar_select %p257, %s254, 1
        %s259 = smul.addr %s256, 4
        %s260 = sadd.s32 %s258, %s259
        %s261 = smul.addr %s260, 8
        %s262 = scalar_lea.vmem %s4, %s261
        %s263 = smul.u32 2, %s23
        %p264 = scmp.lt.s32.totalorder %s263, 1
        %s265 = scalar_select %p264, %s263, 1
        %s266 = smul.addr %s265, 4
        %s267 = scalar_lea.vmem %s1, %s266
        %s268 = smul.u32 2, %s23
        %s269 = smul.u32 2, %s23
        %p270 = scmp.lt.s32.totalorder %s269, 1
        %s271 = scalar_select %p270, %s269, 1
        %s272 = smul.addr %s271, 8
        %s273 = scalar_lea.vmem %s2, %s272
        %s274 = smul.u32 2, %s23
        %s275 = smul.u32 2, %s23
        %p276 = scmp.lt.s32.totalorder %s22, 1
        %s277 = scalar_select %p276, %s22, 1
        %p278 = scmp.lt.s32.totalorder %s275, 1
        %s279 = scalar_select %p278, %s275, 1
        %s280 = smul.addr %s277, 4
        %s281 = sadd.s32 %s279, %s280
        %s282 = smul.addr %s281, 8
        %s283 = scalar_lea.vmem %s4, %s282
        %s284 = smul.u32 2, %s23
        %p286 = scmp.eq.s32.totalorder %s23, 0
        // Predicated region
        $region41: #{tpu_custom_call.1} parent=35 // pred_check
          %p287 = pneg %p286
        $region42: #{tpu_custom_call.1} parent=35 // pred_check_branch
          %289 = sbr.rel (%p287) target = $region44
        $region43: #{tpu_custom_call.1} parent=35 // pred_region
          %v290 = vld [vmem:[%s224] sm:$0xff]
          %v291 = vld [vmem:[%s224 + $0x8] sm:$0xff]
          %v292 = vpack.c.bf16 %v291, %v290
          %v293 = vld [vmem:[%s3] sm:$0xf]
          %v294 = vld [vmem:[%s3 + $0x4] sm:$0xf]
          %v297 = vunpack.c.l.b16 %v293
          %v298 = vunpack.c.l.b16 %v294
          %v299 = vpack.c.b16 %v298, %v297
          %vm301 = vcmask 130048
          %v303 = vsel %vm301, %v292, 0
          %305 = vmatprep.subr.bf16.mxu0 0
          %306 = vmatpush1.bf16.msra.mxu0 %v299
          %307 = vmatprep.subr.bf16.mxu0 0
          %308 = vmatpush1.bf16.msra.mxu0 0
          %309 = vmatprep.subr.bf16.mxu0 0
          %310 = vmatpush1.bf16.msra.mxu0 0
          %311 = vmatprep.subr.bf16.mxu0 0
          %312 = vmatpush1.bf16.msra.mxu0 0
          %313 = vmatprep.subr.bf16.mxu0 0
          %314 = vmatpush1.bf16.msra.mxu0 0
          %315 = vmatprep.subr.bf16.mxu0 0
          %316 = vmatpush1.bf16.msra.mxu0 0
          %317 = vmatprep.subr.bf16.mxu0 0
          %318 = vmatpush1.bf16.msra.mxu0 0
          %319 = vmatprep.subr.bf16.mxu0 0
          %320 = vmatpush1.bf16.msra.mxu0 0
          %321 = vmatprep.subr.bf16.mxu0 0
          %322 = vmatpush1.bf16.msra.mxu0 0
          %323 = vmatprep.subr.bf16.mxu0 0
          %324 = vmatpush1.bf16.msra.mxu0 0
          %325 = vmatprep.subr.bf16.mxu0 0
          %326 = vmatpush1.bf16.msra.mxu0 0
          %327 = vmatprep.subr.bf16.mxu0 0
          %328 = vmatpush1.bf16.msra.mxu0 0
          %329 = vmatprep.subr.bf16.mxu0 0
          %330 = vmatpush1.bf16.msra.mxu0 0
          %331 = vmatprep.subr.bf16.mxu0 0
          %332 = vmatpush1.bf16.msra.mxu0 0
          %333 = vmatprep.subr.bf16.mxu0 0
          %334 = vmatpush1.bf16.msra.mxu0 0
          %335 = vmatprep.subr.bf16.mxu0 0
          %336 = vmatpush1.bf16.msra.mxu0 0
          %337 = vmatprep.mubr.bf16.mxu0 0
          %338 = vmatmul.mubr.bf16.gmra.mrb[0].mxu0 %v303
          %v339 = vpop.f32.mrb[0].mxu0
          %v340 = vadd.f32 0.0, %v339
          %v341 = vpop.f32.mrb[0].mxu0
          %v342 = vpop.f32.mrb[0].mxu0
          %v343 = vadd.f32 0.0, %v342
          %v344 = vpop.f32.mrb[0].mxu0
          %345 = vdwg.mxu0
          %v346 = vpack.c.bf16 %v343, %v340
          %347 = vst.msk [vmem:[#allocation2] sm:$0xff] %vm301, %v346
        $region44: #{tpu_custom_call.1} parent=35 // pred_fallthru
          _
        %v348 = vld [vmem:[%s267] sm:$0xf]
        %v349 = vld [vmem:[%s267 + $0x4] sm:$0xf]
        %v350 = vld [vmem:[%s273] sm:$0xff]
        %v351 = vld [vmem:[%s273 + $0x8] sm:$0xff]
        %v352 = vld [vmem:[#allocation2] sm:$0xff]
        %v355 = vunpack.c.l.b16 %v348
        %v356 = vunpack.c.l.b16 %v349
        %v357 = vpack.c.b16 %v356, %v355
        %vm358 = vcmask 130048
        %v360 = vsel %vm358, %v357, 0
        %362 = vmatprep.subr.bf16.mxu0 0
        %363 = vmatpush1.bf16.msra.mxu0 %v352
        %364 = vmatprep.subr.bf16.mxu0 0
        %365 = vmatpush1.bf16.msra.mxu0 0
        %366 = vmatprep.subr.bf16.mxu0 0
        %367 = vmatpush1.bf16.msra.mxu0 0
        %368 = vmatprep.subr.bf16.mxu0 0
        %369 = vmatpush1.bf16.msra.mxu0 0
        %370 = vmatprep.subr.bf16.mxu0 0
        %371 = vmatpush1.bf16.msra.mxu0 0
        %372 = vmatprep.subr.bf16.mxu0 0
        %373 = vmatpush1.bf16.msra.mxu0 0
        %374 = vmatprep.subr.bf16.mxu0 0
        %375 = vmatpush1.bf16.msra.mxu0 0
        %376 = vmatprep.subr.bf16.mxu0 0
        %377 = vmatpush1.bf16.msra.mxu0 0
        %378 = vmatprep.subr.bf16.mxu0 0
        %379 = vmatpush1.bf16.msra.mxu0 0
        %380 = vmatprep.subr.bf16.mxu0 0
        %381 = vmatpush1.bf16.msra.mxu0 0
        %382 = vmatprep.subr.bf16.mxu0 0
        %383 = vmatpush1.bf16.msra.mxu0 0
        %384 = vmatprep.subr.bf16.mxu0 0
        %385 = vmatpush1.bf16.msra.mxu0 0
        %386 = vmatprep.subr.bf16.mxu0 0
        %387 = vmatpush1.bf16.msra.mxu0 0
        %388 = vmatprep.subr.bf16.mxu0 0
        %389 = vmatpush1.bf16.msra.mxu0 0
        %390 = vmatprep.subr.bf16.mxu0 0
        %391 = vmatpush1.bf16.msra.mxu0 0
        %392 = vmatprep.subr.bf16.mxu0 0
        %393 = vmatpush1.bf16.msra.mxu0 0
        %394 = vmatprep.mubr.bf16.mxu0 0
        %395 = vmatmul.mubr.bf16.gmra.mrb[0].mxu0 %v360
        %v396 = vpop.f32.mrb[0].mxu0
        %v397 = vadd.f32 0.0, %v396
        %v398 = vpop.f32.mrb[0].mxu0
        %v399 = vpop.f32.mrb[0].mxu0
        %v400 = vadd.f32 0.0, %v399
        %v401 = vpop.f32.mrb[0].mxu0
        %402 = vdwg.mxu0
        %404 = vset.pattern.permute.xlu0 0
        %405 = vperm.xlu0 %404, %v350
        %v406 = vpop.permute.xlu0 %405
        %409 = vset.pattern.permute.xlu0 0
        %410 = vperm.xlu0 %409, %v351
        %v411 = vpop.permute.xlu0 %410
        %v413 = vmul.f32 %v406, %v397
        %v414 = vmul.f32 %v411, %v400
        %415 = vset.pattern.permute.xlu0 1
        %416 = vperm.xlu0 %415, %v350
        %v417 = vpop.permute.xlu0 %416
        %419 = vset.pattern.permute.xlu0 1
        %420 = vperm.xlu0 %419, %v351
        %v421 = vpop.permute.xlu0 %420
        %v423 = vmul.f32 %v417, %v397
        %v424 = vmul.f32 %v421, %v400
        %427 = vrot.lane.b32.xlu0 %v423, 120
        %v428 = vpop.permute.xlu0 %427
        %429 = vrot.lane.b32.xlu0 %v424, 120
        %v430 = vpop.permute.xlu0 %429
        %v433 = vsub.f32 %v413, %v428
        %v434 = vsub.f32 %v414, %v430
        %vm435 = vcmask 64512
        %436 = vst.msk [vmem:[%s283] sm:$0xff] %vm435, %v433
        %437 = vst.msk [vmem:[%s283 + $0x8] sm:$0xff] %vm435, %v434
        %438 = vrot.lane.b32.xlu0 %v423, 8
        %v439 = vpop.permute.xlu0 %438
        %440 = vrot.lane.b32.xlu0 %v424, 8
        %v441 = vpop.permute.xlu0 %440
        %v444 = vadd.f32 %v413, %v439
        %v445 = vadd.f32 %v414, %v441
        %448 = vrot.lane.b32.xlu0 %v444, 120
        %v449 = vpop.permute.xlu0 %448
        %450 = vrot.lane.b32.xlu0 %v445, 120
        %v451 = vpop.permute.xlu0 %450
        %s454 = scalar_lea.vmem %s283, 16
        %455 = vst.msk [vmem:[%s454] sm:$0xff] %vm435, %v449
        %456 = vst.msk [vmem:[%s454 + $0x8] sm:$0xff] %vm435, %v451
        %s457 = smul.u32 2, %s23
        %p458 = scmp.lt.s32.totalorder %s22, 1
        %s459 = scalar_select %p458, %s22, 1
        %p460 = scmp.lt.s32.totalorder %s457, 1
        %s461 = scalar_select %p460, %s457, 1
        %s462 = smul.addr %s459, 4
        %s463 = sadd.s32 %s461, %s462
        %s464 = smul.addr %s463, 8
        %s465 = scalar_lea.vmem %s4, %s464
        // Predicated region
        $region45: #{tpu_custom_call.1} parent=35 // pred_check
          %p466 = pneg %p149
        $region46: #{tpu_custom_call.1} parent=35 // pred_check_branch
          %468 = sbr.rel (%p466) target = $region48
        $region47: #{tpu_custom_call.1} parent=35 // pred_region
          %s469 = smul.u32 2, %s23
        $region48: #{tpu_custom_call.1} parent=35 // pred_fallthru
          _
      $region36: #{tpu_custom_call.1} parent=5 // pred_fallthru
        _
      %p470 = scmp.le.s32.totalorder 2, %s13
      // Predicated region
      $region49: #{tpu_custom_call.1} parent=5 // pred_check
        %p471 = pneg %p470
      $region50: #{tpu_custom_call.1} parent=5 // pred_check_branch
        %473 = sbr.rel (%p471) target = $region52
      $region51: #{tpu_custom_call.1} parent=5 // pred_region
        %s474 = ssub.s32 %s13, 2
        // Predicated region
        $region53: #{tpu_custom_call.1} parent=51 // pred_check
          %p475 = pneg %p155
        $region54: #{tpu_custom_call.1} parent=51 // pred_check_branch
          %477 = sbr.rel (%p475) target = $region56
        $region55: #{tpu_custom_call.1} parent=51 // pred_region
          %s478 = smul.u32 2, %s25
          %p479 = scmp.lt.s32.totalorder %s24, 1
          %s480 = scalar_select %p479, %s24, 1
          %p481 = scmp.lt.s32.totalorder %s478, 1
          %s482 = scalar_select %p481, %s478, 1
          %s483 = smul.addr %s480, 4
          %s484 = sadd.s32 %s482, %s483
          %s485 = smul.addr %s484, 8
          %s486 = scalar_lea.vmem %s4, %s485
        $region56: #{tpu_custom_call.1} parent=51 // pred_fallthru
          _
      $region52: #{tpu_custom_call.1} parent=5 // pred_fallthru
        _
    $region6: #{tpu_custom_call.1} parent=1 // loop_footer
      %s17 = sadd.s32 1, %s13
    $region7: #{tpu_custom_call.1} parent=1 // loop_footer_branch
      %12 = sbr.rel target = $region3
    $region8: #{tpu_custom_call.1} parent=1 // loop_exit
      _
    %487 = vsyncpa [#allocation4], 1
    %s488 = scalar_lea.sflag [#allocation4], 1
    %489 = vsyncpa %s488, 1

</llo_original>
